<compile_context>
chip_gen: v7x
topology: tpu7x:2x2x1
jax: 0.10.0
libtpu: 0.0.40
codegen_flags: <defaults>
</compile_context>

<pallas_src>
import functools

import jax
import jax.numpy as jnp
from jax.experimental import pallas as pl
from jax.experimental.pallas import tpu as pltpu


_LANE = 128
_MB = 1024 * 1024

# Fused (resident-slab) path: in + out are each double buffered (~4x slab)
# plus a slab-sized f32 temp for the sum; 4 MiB slabs stay well under the
# 32 MiB scoped-VMEM limit requested below on every generation
# (v5e/v6e 128 MiB physical, v7x 64 MiB physical).
_FUSED_SLAB_LIMIT = 4 * _MB
_FUSED_VMEM_LIMIT = 32 * _MB

# Streaming path: scale kernel footprint ~4x block (double-buffered in + out).
_STREAM_VMEM_LIMIT = 28 * _MB


def _stream_target_bytes():
    """Per-block byte target for the streaming path, tuned per generation.

    v7x (64 MiB VMEM, ~3.2 TB/s HBM) wants larger blocks so the ~0.35 us per
    grid-step overhead stays amortized; v5e/v6e keep ~3 MiB blocks.
    """
    try:
        info = pltpu.get_tpu_info()
        vmem = getattr(info, "vmem_capacity_bytes", None)
        if vmem is not None and vmem <= 64 * _MB:          # v7x-class chip
            return 5 * _MB
    except Exception:
        pass
    return 3 * _MB


def _excite(mean_f32, w1_ref, w2_ref):
    """FC1 -> ReLU -> FC2 -> sigmoid on a (1, C) f32 mean.

    The FCs are tiny (C x C//r), so broadcast-mul + cross-sublane reduce on the
    VPU/XLU is cheaper and safer to lower than a sub-tile MXU matmul.
    """
    w1 = w1_ref[...].astype(jnp.float32)                               # (C, H)
    w2 = w2_ref[...].astype(jnp.float32)                               # (H, C)
    h = jnp.maximum(
        jnp.sum(mean_f32[:, :, None] * w1[None, :, :], axis=1), 0.0)   # (1, H)
    z = jnp.sum(h[:, :, None] * w2[None, :, :], axis=1)                # (1, C)
    return 1.0 / (1.0 + jnp.exp(-z))                                   # (1, C)


# --------------------------------------------------------------------------
# Fused path: whole (1, C, L) slab resident in VMEM, grid = (B,)
# --------------------------------------------------------------------------
def _se_fused_kernel(x_ref, w1_ref, w2_ref, o_ref, *, inv_L):
    # Squeeze: mean over L, accumulated in f32.
    mean = jnp.sum(x_ref[...].astype(jnp.float32), axis=2) * inv_L     # (1, C)
    # Excite.
    g = _excite(mean, w1_ref, w2_ref)                                  # (1, C)
    # Rescale in the input dtype (no f32 upcast of the whole slab).
    gate = g[:, :, None].astype(x_ref.dtype)                           # (1, C, 1)
    o_ref[...] = (x_ref[...] * gate).astype(o_ref.dtype)


# --------------------------------------------------------------------------
# Streaming fallback: pass 1 = squeeze+excite (gate), pass 2 = rescale
# --------------------------------------------------------------------------
def _se_gate_kernel(x_ref, w1_ref, w2_ref, gate_ref, acc_ref, *, last_rem, inv_L):
    """Accumulate sum over L tiles; on the last tile run the excite FCs."""
    li = pl.program_id(1)
    last = pl.num_programs(1) - 1

    @pl.when(li == 0)
    def _():
        acc_ref[...] = jnp.zeros_like(acc_ref)

    if last_rem == 0:
        # Every L tile is full: plain unmasked accumulation on the hot path.
        acc_ref[...] += jnp.sum(x_ref[...].astype(jnp.float32), axis=2)
    else:
        # Only the partial last tile pays for the lane mask.
        @pl.when(li != last)
        def _():
            acc_ref[...] += jnp.sum(x_ref[...].astype(jnp.float32), axis=2)

        @pl.when(li == last)
        def _():
            x = x_ref[...].astype(jnp.float32)
            lane = jax.lax.broadcasted_iota(jnp.int32, x.shape, 2)
            acc_ref[...] += jnp.sum(jnp.where(lane < last_rem, x, 0.0), axis=2)

    @pl.when(li == last)
    def _():
        mean = acc_ref[...] * inv_L                                    # (1, C)
        g = _excite(mean, w1_ref, w2_ref)                              # (1, C)
        # Store directly in (1, C, 1) layout so the scale kernel consumes it
        # without an intervening host-side reshape between the two calls.
        gate_ref[...] = g[:, :, None]


def _se_scale_kernel(x_ref, gate_ref, o_ref):
    """out = x * gate (per-channel); mem-bound, computed in the input dtype."""
    g = gate_ref[...].astype(x_ref.dtype)                              # (1, C, 1)
    o_ref[...] = (x_ref[...] * g).astype(o_ref.dtype)


# --------------------------------------------------------------------------
# Tiling helpers
# --------------------------------------------------------------------------
def _pick_tile_l(L, C, itemsize, target_bytes):
    """Largest lane-aligned L tile whose (C, tile) block is ~target_bytes."""
    if L <= _LANE:
        return int(L)                          # short last dim: full-extent block
    t = (target_bytes // max(C * itemsize, 1)) // _LANE * _LANE
    t = max(int(t), _LANE)
    t = min(t, (L // _LANE) * _LANE)           # stay lane-aligned and <= L
    return int(max(t, _LANE))


def _legalize_tile_l(tile_l, L):
    """Enforce the (8,128) rule: last block dim multiple of 128 or == L."""
    tile_l = int(tile_l)
    if tile_l >= L:
        return int(L)
    t = (tile_l // _LANE) * _LANE
    if t == 0:
        t = min(_LANE, L)
    return int(t)


# --------------------------------------------------------------------------
# Public wrapper
# --------------------------------------------------------------------------
@functools.partial(jax.jit, static_argnames=("tile_l",))
def se_layer(x, w1, w2, *, tile_l=None):
    """SELayer forward.

    x : (B, C, L)          input feature map
    w1: (C//r, C)          first nn.Linear weight (PyTorch (out, in), no bias)
    w2: (C, C//r)          second nn.Linear weight (PyTorch (out, in), no bias)

    tile_l=None selects the fused resident-slab kernel whenever a (C, L) slab
    fits VMEM (the common case), else a streaming two-pass path. Passing an
    explicit tile_l forces the streaming path (used by the tests).
    """
    B, C, L = x.shape
    H, C1 = w1.shape
    C2, H2 = w2.shape
    assert C1 == C and C2 == C and H2 == H and H >= 1

    w1_t = jnp.transpose(w1)        # (C, H)
    w2_t = jnp.transpose(w2)        # (H, C)

    slab_bytes = C * L * x.dtype.itemsize
    if tile_l is None and slab_bytes <= _FUSED_SLAB_LIMIT:
        # ---- Fused path: x read once, written once. ----
        return pl.pallas_call(
            functools.partial(_se_fused_kernel, inv_L=1.0 / L),
            out_shape=jax.ShapeDtypeStruct((B, C, L), x.dtype),
            grid_spec=pltpu.PrefetchScalarGridSpec(
                num_scalar_prefetch=0,
                grid=(B,),
                in_specs=[
                    pl.BlockSpec((1, C, L), lambda b: (b, 0, 0)),
                    pl.BlockSpec((C, H), lambda b: (0, 0)),
                    pl.BlockSpec((H, C), lambda b: (0, 0)),
                ],
                out_specs=pl.BlockSpec((1, C, L), lambda b: (b, 0, 0)),
            ),
            compiler_params=pltpu.CompilerParams(
                dimension_semantics=("parallel",),
                vmem_limit_bytes=_FUSED_VMEM_LIMIT),
        )(x, w1_t, w2_t)

    # ---- Streaming fallback: two lane-dense passes over x. ----
    # TODO(synk): fold both passes into one pallas_call (grid (B, 2, n_l)) to
    # also save the second launch + pipeline warm-up; x is still read twice.
    if tile_l is None:
        tile_l = _pick_tile_l(L, C, x.dtype.itemsize, _stream_target_bytes())
    else:
        tile_l = _legalize_tile_l(tile_l, L)
    n_l = pl.cdiv(L, tile_l)
    last_rem = L % tile_l           # 0 if the last tile is full, else its width

    # Pass 1: squeeze + excite -> gate written directly as (B, C, 1) f32.
    gate = pl.pallas_call(
        functools.partial(_se_gate_kernel, last_rem=last_rem, inv_L=1.0 / L),
        out_shape=jax.ShapeDtypeStruct((B, C, 1), jnp.float32),
        grid_spec=pltpu.PrefetchScalarGridSpec(
            num_scalar_prefetch=0,
            grid=(B, n_l),
            in_specs=[
                pl.BlockSpec((1, C, tile_l), lambda b, l: (b, 0, l)),
                pl.BlockSpec((C, H), lambda b, l: (0, 0)),
                pl.BlockSpec((H, C), lambda b, l: (0, 0)),
            ],
            out_specs=pl.BlockSpec((1, C, 1), lambda b, l: (b, 0, 0)),
            scratch_shapes=[pltpu.VMEM((1, C), jnp.float32)],
        ),
        compiler_params=pltpu.CompilerParams(
            dimension_semantics=("parallel", "arbitrary"),
            vmem_limit_bytes=_STREAM_VMEM_LIMIT),
    )(x, w1_t, w2_t)

    # Pass 2: per-channel rescale of x (mem-bound, native dtype).
    out = pl.pallas_call(
        _se_scale_kernel,
        out_shape=jax.ShapeDtypeStruct((B, C, L), x.dtype),
        grid_spec=pltpu.PrefetchScalarGridSpec(
            num_scalar_prefetch=0,
            grid=(B, n_l),
            in_specs=[
                pl.BlockSpec((1, C, tile_l), lambda b, l: (b, 0, l)),
                pl.BlockSpec((1, C, 1), lambda b, l: (b, 0, 0)),
            ],
            out_specs=pl.BlockSpec((1, C, tile_l), lambda b, l: (b, 0, l)),
        ),
        compiler_params=pltpu.CompilerParams(
            dimension_semantics=("parallel", "parallel"),
            vmem_limit_bytes=_STREAM_VMEM_LIMIT),
    )(x, gate)

    return out


def se_layer_ref(x, w1, w2):
    """Pure-JAX reference matching the PyTorch SELayer forward."""
    mean = jnp.mean(x, axis=2)                                   # (B, C)
    h = jnp.maximum(
        jnp.dot(mean, w1.T, precision=jax.lax.Precision.HIGHEST), 0.0)
    z = jnp.dot(h, w2.T, precision=jax.lax.Precision.HIGHEST)
    g = 1.0 / (1.0 + jnp.exp(-z))                                # sigmoid
    return x * g[:, :, None]


if __name__ == "__main__":
    key = jax.random.PRNGKey(0)
    k1, k2, k3, k4 = jax.random.split(key, 4)

    # (B, C, L) with channel >= reduction so the hidden dim is non-empty.
    B, C, L, reduction = 2, 64, 640, 16
    H = C // reduction

    x = jax.random.normal(k1, (B, C, L), dtype=jnp.float32)
    # nn.Linear(bias=False) weights, PyTorch layout (out_features, in_features).
    w1 = jax.random.normal(k2, (H, C), dtype=jnp.float32) * 0.1
    w2 = jax.random.normal(k3, (C, H), dtype=jnp.float32) * 0.1

    y_ref = se_layer_ref(x, w1, w2)

    # Fused resident-slab path (slab = 64*640*4 B = 160 KiB, easily fits VMEM).
    y0 = se_layer(x, w1, w2)
    jax.block_until_ready(y0)
    # Streaming path with a masked partial last tile (640 % 256 != 0).
    y1 = se_layer(x, w1, w2, tile_l=256)
    jax.block_until_ready(y1)

    assert y0.shape == x.shape and y0.dtype == x.dtype
    assert jnp.allclose(y0, y_ref, atol=1e-5, rtol=1e-5)
    assert jnp.allclose(y1, y_ref, atol=1e-5, rtol=1e-5)

    # L not a multiple of 128: fused full-extent block + streaming partial tile.
    L2 = 333
    x2 = jax.random.normal(k4, (B, C, L2), dtype=jnp.float32)
    y2_ref = se_layer_ref(x2, w1, w2)
    y2 = se_layer(x2, w1, w2)                  # fused path, L % 128 != 0
    y3 = se_layer(x2, w1, w2, tile_l=128)      # streaming, last tile has 77 valid lanes
    jax.block_until_ready(y2)
    jax.block_until_ready(y3)

    assert jnp.allclose(y2, y2_ref, atol=1e-5, rtol=1e-5)
    assert jnp.allclose(y3, y2_ref, atol=1e-5, rtol=1e-5)

    print("KERNEL_OK")
</pallas_src>

<mosaic_0001>
module attributes {stable_mosaic.version = 11 : i64} {
  func.func @_se_fused_kernel(%arg0: i32, %arg1: memref<1x64x640xf32, #tpu.memory_space<vmem>>, %arg2: memref<64x4xf32, #tpu.memory_space<vmem>>, %arg3: memref<4x64xf32, #tpu.memory_space<vmem>>, %arg4: memref<1x64x640xf32, #tpu.memory_space<vmem>>) attributes {dimension_semantics = [#tpu.dimension_semantics<parallel>], iteration_bounds = array<i64: 2>, scalar_prefetch = 0 : i64, scratch_operands = 0 : i64, tpu.core_type = #tpu.core_type<tc>, window_params = [{transform_indices = @transform_0, window_bounds = array<i64: 1, 64, 640>}, {pipeline_mode = #tpu.pipeline_mode<synchronous>, transform_indices = @transform_1, window_bounds = array<i64: 64, 4>}, {pipeline_mode = #tpu.pipeline_mode<synchronous>, transform_indices = @transform_2, window_bounds = array<i64: 4, 64>}, {transform_indices = @transform_3, window_bounds = array<i64: 1, 64, 640>}]} {
    %c0 = arith.constant 0 : index
    %c0_0 = arith.constant 0 : index
    %c0_1 = arith.constant 0 : index
    %0 = vector.load %arg1[%c0, %c0_0, %c0_1] : memref<1x64x640xf32, #tpu.memory_space<vmem>>, vector<1x64x640xf32>
    %cst = arith.constant dense<0.000000e+00> : vector<1x64xf32>
    %1 = vector.multi_reduction <add>, %0, %cst [2] : vector<1x64x640xf32> to vector<1x64xf32>
    %cst_2 = arith.constant 1.562500e-03 : f32
    %2 = vector.broadcast %cst_2 : f32 to vector<1x64xf32>
    %3 = arith.mulf %1, %2 : vector<1x64xf32>
    %c0_3 = arith.constant 0 : index
    %c0_4 = arith.constant 0 : index
    %4 = vector.load %arg2[%c0_3, %c0_4] : memref<64x4xf32, #tpu.memory_space<vmem>>, vector<64x4xf32>
    %c0_5 = arith.constant 0 : index
    %c0_6 = arith.constant 0 : index
    %5 = vector.load %arg3[%c0_5, %c0_6] : memref<4x64xf32, #tpu.memory_space<vmem>>, vector<4x64xf32>
    %6 = vector.shape_cast %3 : vector<1x64xf32> to vector<1x64x1xf32>
    %7 = vector.shape_cast %4 : vector<64x4xf32> to vector<1x64x4xf32>
    %8 = vector.broadcast %6 : vector<1x64x1xf32> to vector<1x64x4xf32>
    %9 = arith.mulf %8, %7 : vector<1x64x4xf32>
    %cst_7 = arith.constant dense<0.000000e+00> : vector<1x4xf32>
    %10 = vector.multi_reduction <add>, %9, %cst_7 [1] : vector<1x64x4xf32> to vector<1x4xf32>
    %cst_8 = arith.constant 0.000000e+00 : f32
    %11 = vector.broadcast %cst_8 : f32 to vector<1x4xf32>
    %12 = arith.maximumf %10, %11 : vector<1x4xf32>
    %13 = vector.shape_cast %12 : vector<1x4xf32> to vector<1x4x1xf32>
    %14 = vector.shape_cast %5 : vector<4x64xf32> to vector<1x4x64xf32>
    %15 = vector.broadcast %13 : vector<1x4x1xf32> to vector<1x4x64xf32>
    %16 = arith.mulf %15, %14 : vector<1x4x64xf32>
    %cst_9 = arith.constant dense<0.000000e+00> : vector<1x64xf32>
    %17 = vector.multi_reduction <add>, %16, %cst_9 [1] : vector<1x4x64xf32> to vector<1x64xf32>
    %cst_10 = arith.constant 0.000000e+00 : f32
    %18 = vector.broadcast %cst_10 : f32 to vector<1x64xf32>
    %19 = arith.subf %18, %17 : vector<1x64xf32>
    %20 = math.exp %19 : vector<1x64xf32>
    %cst_11 = arith.constant 1.000000e+00 : f32
    %21 = vector.broadcast %cst_11 : f32 to vector<1x64xf32>
    %22 = arith.addf %21, %20 : vector<1x64xf32>
    %cst_12 = arith.constant 1.000000e+00 : f32
    %23 = vector.broadcast %cst_12 : f32 to vector<1x64xf32>
    %24 = arith.divf %23, %22 : vector<1x64xf32>
    %25 = vector.shape_cast %24 : vector<1x64xf32> to vector<1x64x1xf32>
    %c0_13 = arith.constant 0 : index
    %c0_14 = arith.constant 0 : index
    %c0_15 = arith.constant 0 : index
    %26 = vector.load %arg1[%c0_13, %c0_14, %c0_15] : memref<1x64x640xf32, #tpu.memory_space<vmem>>, vector<1x64x640xf32>
    %27 = vector.broadcast %25 : vector<1x64x1xf32> to vector<1x64x640xf32>
    %28 = arith.mulf %26, %27 : vector<1x64x640xf32>
    %c0_16 = arith.constant 0 : index
    %c0_17 = arith.constant 0 : index
    %c0_18 = arith.constant 0 : index
    %29 = vector.load %arg4[%c0_16, %c0_17, %c0_18] : memref<1x64x640xf32, #tpu.memory_space<vmem>>, vector<1x64x640xf32>
    tpu.vector_store %arg4[%c0_16, %c0_17, %c0_18], %28 {strides = array<i32>} : memref<1x64x640xf32, #tpu.memory_space<vmem>>, vector<1x64x640xf32>,
    return
  }
  func.func @transform_0(%arg0: i32) -> (i32, i32, i32) {
    %c0_i32 = arith.constant 0 : i32
    %c0_i32_0 = arith.constant 0 : i32
    %c0_i32_1 = arith.constant 0 : i32
    return %arg0, %c0_i32, %c0_i32_0 : i32, i32, i32
  }
  func.func @transform_1(%arg0: i32) -> (i32, i32) {
    %c0_i32 = arith.constant 0 : i32
    %c0_i32_0 = arith.constant 0 : i32
    %c0_i32_1 = arith.constant 0 : i32
    return %c0_i32, %c0_i32_0 : i32, i32
  }
  func.func @transform_2(%arg0: i32) -> (i32, i32) {
    %c0_i32 = arith.constant 0 : i32
    %c0_i32_0 = arith.constant 0 : i32
    %c0_i32_1 = arith.constant 0 : i32
    return %c0_i32, %c0_i32_0 : i32, i32
  }
  func.func @transform_3(%arg0: i32) -> (i32, i32, i32) {
    %c0_i32 = arith.constant 0 : i32
    %c0_i32_0 = arith.constant 0 : i32
    %c0_i32_1 = arith.constant 0 : i32
    return %arg0, %c0_i32, %c0_i32_0 : i32, i32, i32
  }
}

</mosaic_0001>

<llo_original>
// kernel: se_layer.1
$region0: #{se_layer.1}
  #allocation0 [shape = 'u32[]', space=smem, size = 0x4, offset = 0x4, fixed_abs, tag = 'smem constant byte address 0x4 - core index']
  #allocation1 [shape = 'u32[144,128]{1,0:T(1,128)}', space=vmem, size = 0x12000, scoped, tag = 'internal scratch']
  %s0 = inlined_call_operand.hbm [shape: f32[2,64,640], index: 0, kind: input, shape index: {}]
  %s1 = inlined_call_operand.vmem [shape: f32[64,4], index: 1, kind: input, shape index: {}]
  %s2 = inlined_call_operand.vmem [shape: f32[4,64], index: 2, kind: input, shape index: {}]
  %s3 = inlined_call_operand.hbm [shape: f32[2,64,640], index: 3, kind: output, shape index: {}]
  %s4 = sld [smem:[#allocation0]]
  $region49: #{se_layer.1} parent=0
    _
  %s6 = ssub.s32 1, %s4
  %s7 = scalar_select 0, %s6, %s4
  $region1: #{se_layer.1} parent=0
    #allocation2 [shape = 'u8[327680]{0}', space=vmem, size = 0x50000, scoped, tag = 'input window, operand 0']
    #allocation3 [shape = 's32[2]{0}', space=sflag, size = 0x8, scoped, tag = 'scoped memory for se_layer.1']
    #allocation4 [shape = 's32[2]{0}', space=sflag, size = 0x8, scoped, tag = 'scoped memory for se_layer.1']
    #allocation5 [shape = 'u8[327680]{0}', space=vmem, size = 0x50000, scoped, tag = 'output window, operand 0']
    %8 = vsyncpa [#allocation3], 0
    %s9 = scalar_lea.sflag [#allocation3], 1
    %10 = vsyncpa %s9, 0
    %11 = vsyncpa [#allocation4], 0
    %s12 = scalar_lea.sflag [#allocation4], 1
    %13 = vsyncpa %s12, 0
    loop: start=0, step=1, limit=4
    $region2: #{se_layer.1} parent=1 // loop_pre_header
      _
    $region3: #{se_layer.1} parent=1 // loop_header
      %s15 = sphi 0, %s19
      %p16 = scmp.ge.s32.totalorder %s15, 4
      %s25 = sphi 0, %s27
      %s28 = sphi 0, %s25
      %s29 = sphi 0, %s28
      %s45 = sphi 0, %s29
      %s49 = sphi 0, %s49
      %s51 = sphi 0, %s49
      %s52 = sphi 0, %s51
      %s66 = sphi 0, %s52
      %s70 = sphi 0, %s70
      %s72 = sphi 0, %s70
      %s73 = sphi 0, %s72
      %s87 = sphi 0, %s73
      %s93 = sphi 0, %s95
      %s96 = sphi 0, %s93
      %s97 = sphi 0, %s96
      %s113 = sphi 0, %s97
    $region4: #{se_layer.1} parent=1 // loop_header_branch
      %18 = sbr.rel (%p16) target = $region8
    $region5: #{se_layer.1} parent=1 // loop_body
      %s20 = ssub.s32 %s15, 1
      %s21 = ssub.s32 %s15, 2
      %s22 = sadd.s32 %s15, 1
      %s23 = ssub.s32 %s15, %s22
      %p24 = scmp.eq.s32.totalorder %s23, 0
      %s26 = sadd.s32 %s25, 1
      %s27 = scalar_select %p24, %s25, %s26
      %p30 = pneg %p24
      %p31 = scmp.eq.s32.totalorder %s15, 1
      %p32 = por %p30, %p31
      %p33 = scmp.ne.s32.totalorder %s25, %s28
      %p34 = scmp.eq.s32.totalorder %s15, 0
      %p35 = por %p33, %p34
      %p36 = scmp.ne.s32.totalorder %s25, %s28
      %p37 = scmp.eq.s32.totalorder %s20, 1
      %p38 = por %p36, %p37
      %p39 = scmp.ne.s32.totalorder %s28, %s29
      %p40 = scmp.eq.s32.totalorder %s20, 0
      %p41 = por %p39, %p40
      %p42 = scmp.ne.s32.totalorder %s28, %s29
      %p43 = scmp.eq.s32.totalorder %s21, 1
      %p44 = por %p42, %p43
      %p46 = scmp.ne.s32.totalorder %s29, %s45
      %p47 = scmp.eq.s32.totalorder %s21, 0
      %p48 = por %p46, %p47
      %s50 = sadd.s32 %s49, 1
      %p53 = scmp.eq.s32.totalorder %s15, 1
      %p54 = scmp.ne.s32.totalorder %s49, %s51
      %p55 = scmp.eq.s32.totalorder %s15, 0
      %p56 = por %p54, %p55
      %p57 = scmp.ne.s32.totalorder %s49, %s51
      %p58 = scmp.eq.s32.totalorder %s20, 1
      %p59 = por %p57, %p58
      %p60 = scmp.ne.s32.totalorder %s51, %s52
      %p61 = scmp.eq.s32.totalorder %s20, 0
      %p62 = por %p60, %p61
      %p63 = scmp.ne.s32.totalorder %s51, %s52
      %p64 = scmp.eq.s32.totalorder %s21, 1
      %p65 = por %p63, %p64
      %p67 = scmp.ne.s32.totalorder %s52, %s66
      %p68 = scmp.eq.s32.totalorder %s21, 0
      %p69 = por %p67, %p68
      %s71 = sadd.s32 %s70, 1
      %p74 = scmp.eq.s32.totalorder %s15, 1
      %p75 = scmp.ne.s32.totalorder %s70, %s72
      %p76 = scmp.eq.s32.totalorder %s15, 0
      %p77 = por %p75, %p76
      %p78 = scmp.ne.s32.totalorder %s70, %s72
      %p79 = scmp.eq.s32.totalorder %s20, 1
      %p80 = por %p78, %p79
      %p81 = scmp.ne.s32.totalorder %s72, %s73
      %p82 = scmp.eq.s32.totalorder %s20, 0
      %p83 = por %p81, %p82
      %p84 = scmp.ne.s32.totalorder %s72, %s73
      %p85 = scmp.eq.s32.totalorder %s21, 1
      %p86 = por %p84, %p85
      %p88 = scmp.ne.s32.totalorder %s73, %s87
      %p89 = scmp.eq.s32.totalorder %s21, 0
      %p90 = por %p88, %p89
      %s91 = ssub.s32 %s15, %s22
      %p92 = scmp.eq.s32.totalorder %s91, 0
      %s94 = sadd.s32 %s93, 1
      %s95 = scalar_select %p92, %s93, %s94
      %p98 = pneg %p92
      %p99 = scmp.eq.s32.totalorder %s15, 1
      %p100 = por %p98, %p99
      %p101 = scmp.ne.s32.totalorder %s93, %s96
      %p102 = scmp.eq.s32.totalorder %s15, 0
      %p103 = por %p101, %p102
      %p104 = scmp.ne.s32.totalorder %s93, %s96
      %p105 = scmp.eq.s32.totalorder %s20, 1
      %p106 = por %p104, %p105
      %p107 = scmp.ne.s32.totalorder %s96, %s97
      %p108 = scmp.eq.s32.totalorder %s20, 0
      %p109 = por %p107, %p108
      %p110 = scmp.ne.s32.totalorder %s96, %s97
      %p111 = scmp.eq.s32.totalorder %s21, 1
      %p112 = por %p110, %p111
      %p114 = scmp.ne.s32.totalorder %s97, %s113
      %p115 = scmp.eq.s32.totalorder %s21, 0
      %p116 = por %p114, %p115
      %p117 = scmp.le.s32.totalorder 1, %s15
      %p118 = scmp.lt.s32.totalorder %s15, 3
      %p119 = pnand %p117, %p118
      %p120 = pneg %p119
      // Predicated region
      $region9: #{se_layer.1} parent=5 // pred_check
        _
      $region10: #{se_layer.1} parent=5 // pred_check_branch
        %122 = sbr.rel (%p119) target = $region12
      $region11: #{se_layer.1} parent=5 // pred_region
        %s123 = ssub.s32 %s15, 1
        // Predicated region
        $region13: #{se_layer.1} parent=11 // pred_check
          %p124 = pneg %p62
        $region14: #{se_layer.1} parent=11 // pred_check_branch
          %126 = sbr.rel (%p124) target = $region16
        $region15: #{se_layer.1} parent=11 // pred_region
          _
        $region16: #{se_layer.1} parent=11 // pred_fallthru
          _
        // Predicated region
        $region17: #{se_layer.1} parent=11 // pred_check
          %p127 = pneg %p83
        $region18: #{se_layer.1} parent=11 // pred_check_branch
          %129 = sbr.rel (%p127) target = $region20
        $region19: #{se_layer.1} parent=11 // pred_region
          _
        $region20: #{se_layer.1} parent=11 // pred_fallthru
          _
      $region12: #{se_layer.1} parent=5 // pred_fallthru
        _
      %p130 = scmp.lt.s32.totalorder %s15, 2
      // Predicated region
      $region21: #{se_layer.1} parent=5 // pred_check
        %p131 = pneg %p130
      $region22: #{se_layer.1} parent=5 // pred_check_branch
        %133 = sbr.rel (%p131) target = $region24
      $region23: #{se_layer.1} parent=5 // pred_region
        // Predicated region
        $region25: #{se_layer.1} parent=23 // pred_check
          %p134 = pneg %p35
        $region26: #{se_layer.1} parent=23 // pred_check_branch
          %136 = sbr.rel (%p134) target = $region28
        $region27: #{se_layer.1} parent=23 // pred_region
          %s137 = sand.u32 %s25, 1
          %s138 = scalar_lea.sflag [#allocation3], %s137
          %s139 = sand.u32 %s25, 1
          %s140 = smul.addr %s139, 320
          %s141 = scalar_lea.vmem [#allocation2], %s140
          %s143 = ssub.s32 5120, 5120
          %144 = vsyncadd %s138, %s143
          %s145 = smul.addr %s15, 40
          %s146 = smul.addr %s145, 128
          %s147 = scalar_lea.hbm %s0, %s146
          %s148 = sshll.u32 %s141, 4
          %s149 = int_to_ptr.vmem [resolvable:$true] %s148
          %154 = dma.hbm_to_vmem [thread:$0]  %s147, 5120, %s149, %s138, 640, 640, 40
        $region28: #{se_layer.1} parent=23 // pred_fallthru
          _
      $region24: #{se_layer.1} parent=5 // pred_fallthru
        _
      %p155 = scmp.le.s32.totalorder 1, %s15
      %p156 = scmp.lt.s32.totalorder %s15, 3
      %p157 = pnand %p155, %p156
      %p158 = pneg %p157
      // Predicated region
      $region29: #{se_layer.1} parent=5 // pred_check
        _
      $region30: #{se_layer.1} parent=5 // pred_check_branch
        %160 = sbr.rel (%p157) target = $region32
      $region31: #{se_layer.1} parent=5 // pred_region
        %s161 = ssub.s32 %s15, 1
        %s162 = sand.u32 %s28, 1
        %s163 = scalar_lea.sflag [#allocation3], %s162
        %s164 = sand.u32 %s28, 1
        %s165 = smul.addr %s164, 320
        %s166 = scalar_lea.vmem [#allocation2], %s165
        // Predicated region
        $region33: #{se_layer.1} parent=31 // pred_check
          %p167 = pneg %p41
        $region34: #{se_layer.1} parent=31 // pred_check_branch
          %169 = sbr.rel (%p167) target = $region36
        $region35: #{se_layer.1} parent=31 // pred_region
          %170 = dma.done %s163, 5120
        $region36: #{se_layer.1} parent=31 // pred_fallthru
          _
        %s171 = sand.u32 %s28, 1
        %s172 = scalar_lea.sflag [#allocation3], %s171
        %s173 = sand.u32 %s28, 1
        %s174 = smul.addr %s173, 320
        %s175 = scalar_lea.vmem [#allocation2], %s174
        %p176 = pneg %p41
        %p177 = pneg %p38
        %p178 = pneg %p62
        %p179 = pneg %p59
        %p180 = pneg %p83
        %p181 = pneg %p80
        %p182 = pneg %p109
        %p183 = pneg %p106
        %s184 = sand.u32 %s96, 1
        %s185 = scalar_lea.sflag [#allocation4], %s184
        %s186 = sand.u32 %s96, 1
        %s187 = smul.addr %s186, 320
        %s188 = scalar_lea.vmem [#allocation5], %s187
        %v189 = vld [vmem:[%s166] sm:$0xff]
        %v190 = vld [vmem:[%s166 + $0x8] sm:$0xff]
        %v191 = vld [vmem:[%s166 + $0x10] sm:$0xff]
        %v192 = vld [vmem:[%s166 + $0x18] sm:$0xff]
        %v193 = vld [vmem:[%s166 + $0x20] sm:$0xff]
        %v194 = vld [vmem:[%s166 + $0x28] sm:$0xff]
        %v195 = vld [vmem:[%s166 + $0x30] sm:$0xff]
        %v196 = vld [vmem:[%s166 + $0x38] sm:$0xff]
        %v197 = vld [vmem:[%s166 + $0x40] sm:$0xff]
        %v198 = vld [vmem:[%s166 + $0x48] sm:$0xff]
        %v199 = vld [vmem:[%s166 + $0x50] sm:$0xff]
        %v200 = vld [vmem:[%s166 + $0x58] sm:$0xff]
        %v201 = vld [vmem:[%s166 + $0x60] sm:$0xff]
        %v202 = vld [vmem:[%s166 + $0x68] sm:$0xff]
        %v203 = vld [vmem:[%s166 + $0x70] sm:$0xff]
        %v204 = vld [vmem:[%s166 + $0x78] sm:$0xff]
        %v205 = vld [vmem:[%s166 + $0x80] sm:$0xff]
        %v206 = vld [vmem:[%s166 + $0x88] sm:$0xff]
        %v207 = vld [vmem:[%s166 + $0x90] sm:$0xff]
        %v208 = vld [vmem:[%s166 + $0x98] sm:$0xff]
        %v209 = vld [vmem:[%s166 + $0xa0] sm:$0xff]
        %v210 = vld [vmem:[%s166 + $0xa8] sm:$0xff]
        %v211 = vld [vmem:[%s166 + $0xb0] sm:$0xff]
        %v212 = vld [vmem:[%s166 + $0xb8] sm:$0xff]
        %v213 = vld [vmem:[%s166 + $0xc0] sm:$0xff]
        %v214 = vld [vmem:[%s166 + $0xc8] sm:$0xff]
        %v215 = vld [vmem:[%s166 + $0xd0] sm:$0xff]
        %v216 = vld [vmem:[%s166 + $0xd8] sm:$0xff]
        %v217 = vld [vmem:[%s166 + $0xe0] sm:$0xff]
        %v218 = vld [vmem:[%s166 + $0xe8] sm:$0xff]
        %v219 = vld [vmem:[%s166 + $0xf0] sm:$0xff]
        %v220 = vld [vmem:[%s166 + $0xf8] sm:$0xff]
        %v221 = vld [vmem:[%s166 + $0x100] sm:$0xff]
        %v222 = vld [vmem:[%s166 + $0x108] sm:$0xff]
        %v223 = vld [vmem:[%s166 + $0x110] sm:$0xff]
        %v224 = vld [vmem:[%s166 + $0x118] sm:$0xff]
        %v225 = vld [vmem:[%s166 + $0x120] sm:$0xff]
        %v226 = vld [vmem:[%s166 + $0x128] sm:$0xff]
        %v227 = vld [vmem:[%s166 + $0x130] sm:$0xff]
        %v228 = vld [vmem:[%s166 + $0x138] sm:$0xff]
        %v229 = vadd.f32 %v189, %v190
        %v230 = vadd.f32 %v229, %v191
        %v231 = vadd.f32 %v230, %v192
        %v232 = vadd.f32 %v231, %v193
        %233 = vadd.xlane.f32.xlu0 %v232
        %v234 = vpop.xlane.xlu0 %233
        %v235 = vadd.f32 %v194, %v195
        %v236 = vadd.f32 %v235, %v196
        %v237 = vadd.f32 %v236, %v197
        %v238 = vadd.f32 %v237, %v198
        %239 = vadd.xlane.f32.xlu0 %v238
        %v240 = vpop.xlane.xlu0 %239
        %v241 = vadd.f32 %v199, %v200
        %v242 = vadd.f32 %v241, %v201
        %v243 = vadd.f32 %v242, %v202
        %v244 = vadd.f32 %v243, %v203
        %245 = vadd.xlane.f32.xlu0 %v244
        %v246 = vpop.xlane.xlu0 %245
        %v247 = vadd.f32 %v204, %v205
        %v248 = vadd.f32 %v247, %v206
        %v249 = vadd.f32 %v248, %v207
        %v250 = vadd.f32 %v249, %v208
        %251 = vadd.xlane.f32.xlu0 %v250
        %v252 = vpop.xlane.xlu0 %251
        %v253 = vadd.f32 %v209, %v210
        %v254 = vadd.f32 %v253, %v211
        %v255 = vadd.f32 %v254, %v212
        %v256 = vadd.f32 %v255, %v213
        %257 = vadd.xlane.f32.xlu0 %v256
        %v258 = vpop.xlane.xlu0 %257
        %v259 = vadd.f32 %v214, %v215
        %v260 = vadd.f32 %v259, %v216
        %v261 = vadd.f32 %v260, %v217
        %v262 = vadd.f32 %v261, %v218
        %263 = vadd.xlane.f32.xlu0 %v262
        %v264 = vpop.xlane.xlu0 %263
        %v265 = vadd.f32 %v219, %v220
        %v266 = vadd.f32 %v265, %v221
        %v267 = vadd.f32 %v266, %v222
        %v268 = vadd.f32 %v267, %v223
        %269 = vadd.xlane.f32.xlu0 %v268
        %v270 = vpop.xlane.xlu0 %269
        %v271 = vadd.f32 %v224, %v225
        %v272 = vadd.f32 %v271, %v226
        %v273 = vadd.f32 %v272, %v227
        %v274 = vadd.f32 %v273, %v228
        %275 = vadd.xlane.f32.xlu0 %v274
        %v276 = vpop.xlane.xlu0 %275
        %v277 = vmul.f32 %v234, 0.0015625
        %v278 = vmul.f32 %v240, 0.0015625
        %v279 = vmul.f32 %v246, 0.0015625
        %v280 = vmul.f32 %v252, 0.0015625
        %v281 = vmul.f32 %v258, 0.0015625
        %v282 = vmul.f32 %v264, 0.0015625
        %v283 = vmul.f32 %v270, 0.0015625
        %v284 = vmul.f32 %v276, 0.0015625
        %v285 = vld [vmem:[%s1] sm:$0xff]
        %v286 = vld [vmem:[%s1 + $0x8] sm:$0xff]
        %v287 = vld [vmem:[%s1 + $0x10] sm:$0xff]
        %v288 = vld [vmem:[%s1 + $0x18] sm:$0xff]
        %v289 = vld [vmem:[%s1 + $0x20] sm:$0xff]
        %v290 = vld [vmem:[%s1 + $0x28] sm:$0xff]
        %v291 = vld [vmem:[%s1 + $0x30] sm:$0xff]
        %v292 = vld [vmem:[%s1 + $0x38] sm:$0xff]
        %v293 = vld [vmem:[%s2] sm:$0xf]
        %v294 = vmul.f32 %v277, %v285
        %v295 = vmul.f32 %v278, %v286
        %v296 = vmul.f32 %v279, %v287
        %v297 = vmul.f32 %v280, %v288
        %v298 = vmul.f32 %v281, %v289
        %v299 = vmul.f32 %v282, %v290
        %v300 = vmul.f32 %v283, %v291
        %v301 = vmul.f32 %v284, %v292
        %vm302 = vcmask 31744
        %v303 = vsel %vm302, %v294, 0.0
        %v304 = vsel %vm302, %v295, 0.0
        %v305 = vadd.f32 %v303, %v304
        %v306 = vsel %vm302, %v296, 0.0
        %v307 = vadd.f32 %v305, %v306
        %v308 = vsel %vm302, %v297, 0.0
        %v309 = vadd.f32 %v307, %v308
        %v310 = vsel %vm302, %v298, 0.0
        %v311 = vadd.f32 %v309, %v310
        %v312 = vsel %vm302, %v299, 0.0
        %v313 = vadd.f32 %v311, %v312
        %v314 = vsel %vm302, %v300, 0.0
        %v315 = vadd.f32 %v313, %v314
        %v316 = vsel %vm302, %v301, 0.0
        %v317 = vadd.f32 %v315, %v316
        %v318 = vrot.slane %v317, 4
        %v319 = vadd.f32 %v317, %v318
        %v320 = vrot.slane %v319, 2
        %v321 = vadd.f32 %v319, %v320
        %v322 = vrot.slane %v321, 1
        %v323 = vadd.f32 %v321, %v322
        %v324 = vmax.f32 %v323, 0.0
        %326 = vbcast.lane.b32.xlu0 %v324, 256
        %v327 = vpop.permute.xlu0 %326
        %v328 = vmul.f32 %v327, %v293
        %vm329 = vcmask 519168
        %v330 = vsel %vm329, %v328, 0.0
        %v331 = vrot.slane %v330, 4
        %v332 = vadd.f32 %v330, %v331
        %v333 = vrot.slane %v332, 2
        %v334 = vadd.f32 %v332, %v333
        %v335 = vrot.slane %v334, 1
        %v336 = vadd.f32 %v334, %v335
        %v337 = vsub.f32 0.0, %v336
        %v338 = vmul.f32 %v337, 1.442695
        %v339 = vpow.pop %v338
        %v340 = vadd.f32 %v339, 1.0
        %v341 = vrcp.pop %v340
        %v342 = vmul.f32 1.0, %v341
        %344 = vbcast.lane.b32.xlu0 %v342, 256
        %v345 = vpop.permute.xlu0 %344
        %s347 = sor.u32 256, 8
        %348 = vbcast.lane.b32.xlu0 %v342, %s347
        %v349 = vpop.permute.xlu0 %348
        %s351 = sor.u32 256, 16
        %352 = vbcast.lane.b32.xlu0 %v342, %s351
        %v353 = vpop.permute.xlu0 %352
        %s355 = sor.u32 256, 24
        %356 = vbcast.lane.b32.xlu0 %v342, %s355
        %v357 = vpop.permute.xlu0 %356
        %s359 = sor.u32 256, 32
        %360 = vbcast.lane.b32.xlu0 %v342, %s359
        %v361 = vpop.permute.xlu0 %360
        %s363 = sor.u32 256, 40
        %364 = vbcast.lane.b32.xlu0 %v342, %s363
        %v365 = vpop.permute.xlu0 %364
        %s367 = sor.u32 256, 48
        %368 = vbcast.lane.b32.xlu0 %v342, %s367
        %v369 = vpop.permute.xlu0 %368
        %s371 = sor.u32 256, 56
        %372 = vbcast.lane.b32.xlu0 %v342, %s371
        %v373 = vpop.permute.xlu0 %372
        %v374 = vmul.f32 %v189, %v345
        %v375 = vmul.f32 %v190, %v345
        %v376 = vmul.f32 %v191, %v345
        %v377 = vmul.f32 %v192, %v345
        %v378 = vmul.f32 %v193, %v345
        %v379 = vmul.f32 %v194, %v349
        %v380 = vmul.f32 %v195, %v349
        %v381 = vmul.f32 %v196, %v349
        %v382 = vmul.f32 %v197, %v349
        %v383 = vmul.f32 %v198, %v349
        %v384 = vmul.f32 %v199, %v353
        %v385 = vmul.f32 %v200, %v353
        %v386 = vmul.f32 %v201, %v353
        %v387 = vmul.f32 %v202, %v353
        %v388 = vmul.f32 %v203, %v353
        %v389 = vmul.f32 %v204, %v357
        %v390 = vmul.f32 %v205, %v357
        %v391 = vmul.f32 %v206, %v357
        %v392 = vmul.f32 %v207, %v357
        %v393 = vmul.f32 %v208, %v357
        %v394 = vmul.f32 %v209, %v361
        %v395 = vmul.f32 %v210, %v361
        %v396 = vmul.f32 %v211, %v361
        %v397 = vmul.f32 %v212, %v361
        %v398 = vmul.f32 %v213, %v361
        %v399 = vmul.f32 %v214, %v365
        %v400 = vmul.f32 %v215, %v365
        %v401 = vmul.f32 %v216, %v365
        %v402 = vmul.f32 %v217, %v365
        %v403 = vmul.f32 %v218, %v365
        %v404 = vmul.f32 %v219, %v369
        %v405 = vmul.f32 %v220, %v369
        %v406 = vmul.f32 %v221, %v369
        %v407 = vmul.f32 %v222, %v369
        %v408 = vmul.f32 %v223, %v369
        %v409 = vmul.f32 %v224, %v373
        %v410 = vmul.f32 %v225, %v373
        %v411 = vmul.f32 %v226, %v373
        %v412 = vmul.f32 %v227, %v373
        %v413 = vmul.f32 %v228, %v373
        %414 = vst [vmem:[%s188] sm:$0xff] %v374
        %415 = vst [vmem:[%s188 + $0x8] sm:$0xff] %v375
        %416 = vst [vmem:[%s188 + $0x10] sm:$0xff] %v376
        %417 = vst [vmem:[%s188 + $0x18] sm:$0xff] %v377
        %418 = vst [vmem:[%s188 + $0x20] sm:$0xff] %v378
        %419 = vst [vmem:[%s188 + $0x28] sm:$0xff] %v379
        %420 = vst [vmem:[%s188 + $0x30] sm:$0xff] %v380
        %421 = vst [vmem:[%s188 + $0x38] sm:$0xff] %v381
        %422 = vst [vmem:[%s188 + $0x40] sm:$0xff] %v382
        %423 = vst [vmem:[%s188 + $0x48] sm:$0xff] %v383
        %424 = vst [vmem:[%s188 + $0x50] sm:$0xff] %v384
        %425 = vst [vmem:[%s188 + $0x58] sm:$0xff] %v385
        %426 = vst [vmem:[%s188 + $0x60] sm:$0xff] %v386
        %427 = vst [vmem:[%s188 + $0x68] sm:$0xff] %v387
        %428 = vst [vmem:[%s188 + $0x70] sm:$0xff] %v388
        %429 = vst [vmem:[%s188 + $0x78] sm:$0xff] %v389
        %430 = vst [vmem:[%s188 + $0x80] sm:$0xff] %v390
        %431 = vst [vmem:[%s188 + $0x88] sm:$0xff] %v391
        %432 = vst [vmem:[%s188 + $0x90] sm:$0xff] %v392
        %433 = vst [vmem:[%s188 + $0x98] sm:$0xff] %v393
        %434 = vst [vmem:[%s188 + $0xa0] sm:$0xff] %v394
        %435 = vst [vmem:[%s188 + $0xa8] sm:$0xff] %v395
        %436 = vst [vmem:[%s188 + $0xb0] sm:$0xff] %v396
        %437 = vst [vmem:[%s188 + $0xb8] sm:$0xff] %v397
        %438 = vst [vmem:[%s188 + $0xc0] sm:$0xff] %v398
        %439 = vst [vmem:[%s188 + $0xc8] sm:$0xff] %v399
        %440 = vst [vmem:[%s188 + $0xd0] sm:$0xff] %v400
        %441 = vst [vmem:[%s188 + $0xd8] sm:$0xff] %v401
        %442 = vst [vmem:[%s188 + $0xe0] sm:$0xff] %v402
        %443 = vst [vmem:[%s188 + $0xe8] sm:$0xff] %v403
        %444 = vst [vmem:[%s188 + $0xf0] sm:$0xff] %v404
        %445 = vst [vmem:[%s188 + $0xf8] sm:$0xff] %v405
        %446 = vst [vmem:[%s188 + $0x100] sm:$0xff] %v406
        %447 = vst [vmem:[%s188 + $0x108] sm:$0xff] %v407
        %448 = vst [vmem:[%s188 + $0x110] sm:$0xff] %v408
        %449 = vst [vmem:[%s188 + $0x118] sm:$0xff] %v409
        %450 = vst [vmem:[%s188 + $0x120] sm:$0xff] %v410
        %451 = vst [vmem:[%s188 + $0x128] sm:$0xff] %v411
        %452 = vst [vmem:[%s188 + $0x130] sm:$0xff] %v412
        %453 = vst [vmem:[%s188 + $0x138] sm:$0xff] %v413
        %s454 = sand.u32 %s96, 1
        %s455 = scalar_lea.sflag [#allocation4], %s454
        %s456 = sand.u32 %s96, 1
        %s457 = smul.addr %s456, 320
        %s458 = scalar_lea.vmem [#allocation5], %s457
        // Predicated region
        $region37: #{se_layer.1} parent=31 // pred_check
          %p459 = pneg %p106
        $region38: #{se_layer.1} parent=31 // pred_check_branch
          %461 = sbr.rel (%p459) target = $region40
        $region39: #{se_layer.1} parent=31 // pred_region
          %s463 = ssub.s32 5120, 5120
          %464 = vsyncadd %s455, %s463
          %s465 = smul.addr %s20, 40
          %s466 = smul.addr %s465, 128
          %s467 = scalar_lea.hbm %s3, %s466
          %s468 = sshll.u32 %s458, 4
          %s469 = int_to_ptr.vmem [resolvable:$true] %s468
          %474 = dma.vmem_to_hbm [thread:$0]  %s469, 5120, %s467, %s455, 640, 640, 40
        $region40: #{se_layer.1} parent=31 // pred_fallthru
          _
      $region32: #{se_layer.1} parent=5 // pred_fallthru
        _
      %p475 = scmp.le.s32.totalorder 2, %s15
      // Predicated region
      $region41: #{se_layer.1} parent=5 // pred_check
        %p476 = pneg %p475
      $region42: #{se_layer.1} parent=5 // pred_check_branch
        %478 = sbr.rel (%p476) target = $region44
      $region43: #{se_layer.1} parent=5 // pred_region
        %s479 = ssub.s32 %s15, 2
        // Predicated region
        $region45: #{se_layer.1} parent=43 // pred_check
          %p480 = pneg %p112
        $region46: #{se_layer.1} parent=43 // pred_check_branch
          %482 = sbr.rel (%p480) target = $region48
        $region47: #{se_layer.1} parent=43 // pred_region
          %s483 = sand.u32 %s97, 1
          %s484 = scalar_lea.sflag [#allocation4], %s483
          %s485 = sand.u32 %s97, 1
          %s486 = smul.addr %s485, 320
          %s487 = scalar_lea.vmem [#allocation5], %s486
          %488 = dma.done %s484, 5120
        $region48: #{se_layer.1} parent=43 // pred_fallthru
          _
      $region44: #{se_layer.1} parent=5 // pred_fallthru
        _
    $region6: #{se_layer.1} parent=1 // loop_footer
      %s19 = sadd.s32 1, %s15
    $region7: #{se_layer.1} parent=1 // loop_footer_branch
      %14 = sbr.rel target = $region3
    $region8: #{se_layer.1} parent=1 // loop_exit
      _
    %489 = vsyncpa [#allocation3], 1
    %s490 = scalar_lea.sflag [#allocation3], 1
    %491 = vsyncpa %s490, 1
    %492 = vsyncpa [#allocation4], 1
    %s493 = scalar_lea.sflag [#allocation4], 1
    %494 = vsyncpa %s493, 1

</llo_original>
